<compile_context>
chip_gen: v5e
topology: v5e:2x2
jax: 0.10.0
libtpu: 0.0.40
codegen_flags: <defaults>
</compile_context>

<pallas_src>
import jax
import jax.numpy as jnp
from jax.experimental import pallas as pl
from jax.experimental.pallas import tpu as pltpu


def _scale_bias_kernel(x_ref, s_ref, b_ref, o_ref):
    # x_ref: (TILE_M, D); s_ref/b_ref: (1, D) -> broadcast along sublanes.
    o_ref[...] = (x_ref[...] * s_ref[...] + b_ref[...]).astype(o_ref.dtype)


def _round_up(n, m):
    return ((n + m - 1) // m) * m


def scale_bias(x, scale, bias, *, tile_m=512):
    """y = x * scale + bias with per-feature scale/bias broadcast over leading dims."""
    orig_shape = x.shape
    D = orig_shape[-1]
    M = 1
    for d in orig_shape[:-1]:
        M *= d
    x2d = x.reshape(M, D)

    # Row tile must be a multiple of 8 (sublane) or equal the (padded) row count.
    tm = min(tile_m, _round_up(M, 8))
    M_pad = _round_up(M, tm)
    if M_pad != M:
        x2d = jnp.pad(x2d, ((0, M_pad - M), (0, 0)))

    # Lane-dense (1, D) rows; stay resident in VMEM across all grid steps.
    s2d = scale.reshape(1, D).astype(x.dtype)
    b2d = bias.reshape(1, D).astype(x.dtype)

    itemsize = jnp.dtype(x.dtype).itemsize
    grid = (M_pad // tm,)

    out2d = pl.pallas_call(
        _scale_bias_kernel,
        out_shape=jax.ShapeDtypeStruct((M_pad, D), x.dtype),
        grid=grid,
        in_specs=[
            pl.BlockSpec((tm, D), lambda i: (i, 0)),   # x tile, streamed
            pl.BlockSpec((1, D), lambda i: (0, 0)),    # scale, VMEM-resident
            pl.BlockSpec((1, D), lambda i: (0, 0)),    # bias,  VMEM-resident
        ],
        out_specs=pl.BlockSpec((tm, D), lambda i: (i, 0)),
        compiler_params=pltpu.CompilerParams(
            dimension_semantics=("parallel",)),
        cost_estimate=pl.CostEstimate(
            flops=2 * M_pad * D,
            transcendentals=0,
            bytes_accessed=(2 * M_pad * D + 2 * D) * itemsize),
    )(x2d, s2d, b2d)

    if M_pad != M:
        out2d = out2d[:M]
    return out2d.reshape(orig_shape)


class ScaleBiasLayer:
    """Pallas analogue of the PyTorch ScaleBiasLayer.

    y = x * scale + bias, scale/bias of shape (d_model,).
    adaptive_scale=False keeps the fixed ones/zeros buffers (effective no-op),
    matching the PyTorch export-compatibility path.
    """

    def __init__(self, d_model: int, adaptive_scale: bool):
        self.adaptive_scale = adaptive_scale
        self.scale = jnp.ones((d_model,), dtype=jnp.float32)
        self.bias = jnp.zeros((d_model,), dtype=jnp.float32)

    def __call__(self, x):
        return scale_bias(x, self.scale, self.bias)


if __name__ == "__main__":
    key = jax.random.PRNGKey(0)
    kx, ks, kb, kx2 = jax.random.split(key, 4)

    # Small demo shapes; d_model chosen lane-dense (multiple of 128).
    B, T, D = 2, 8, 128
    x = jax.random.normal(kx, (B, T, D), dtype=jnp.float32)

    # Adaptive path with "learned" (random) parameters.
    layer = ScaleBiasLayer(D, adaptive_scale=True)
    layer.scale = jax.random.normal(ks, (D,), dtype=jnp.float32)
    layer.bias = jax.random.normal(kb, (D,), dtype=jnp.float32)

    out = jax.block_until_ready(layer(x))
    ref = x * layer.scale.reshape(1, 1, -1) + layer.bias.reshape(1, 1, -1)
    assert out.shape == x.shape
    assert jnp.allclose(out, ref, atol=1e-6, rtol=1e-6), "adaptive mismatch"

    # Fixed (non-adaptive) path: scale=1, bias=0 -> identity.
    layer_fixed = ScaleBiasLayer(D, adaptive_scale=False)
    out_fixed = jax.block_until_ready(layer_fixed(x))
    assert jnp.allclose(out_fixed, x, atol=1e-6, rtol=1e-6), "fixed mismatch"

    # Exercise the tiled + row-padded path (rows not a multiple of the tile).
    B2, T2 = 4, 300  # 1200 rows -> TILE_M=512, padded to 1536, grid=(3,)
    x2 = jax.random.normal(kx2, (B2, T2, D), dtype=jnp.float32)
    out2 = jax.block_until_ready(layer(x2))
    ref2 = x2 * layer.scale.reshape(1, 1, -1) + layer.bias.reshape(1, 1, -1)
    assert jnp.allclose(out2, ref2, atol=1e-6, rtol=1e-6), "tiled mismatch"

    print("KERNEL_OK")
</pallas_src>

<mosaic_0001>
module attributes {stable_mosaic.version = 11 : i64} {
  func.func @_scale_bias_kernel(%arg0: i32, %arg1: memref<16x128xf32, #tpu.memory_space<vmem>>, %arg2: memref<1x128xf32, #tpu.memory_space<vmem>>, %arg3: memref<1x128xf32, #tpu.memory_space<vmem>>, %arg4: memref<16x128xf32, #tpu.memory_space<vmem>>) attributes {dimension_semantics = [#tpu.dimension_semantics<parallel>], iteration_bounds = array<i64: 1>, scalar_prefetch = 0 : i64, scratch_operands = 0 : i64, tpu.core_type = #tpu.core_type<tc>, window_params = [{transform_indices = @transform_0, window_bounds = array<i64: 16, 128>}, {pipeline_mode = #tpu.pipeline_mode<synchronous>, transform_indices = @transform_1, window_bounds = array<i64: 1, 128>}, {pipeline_mode = #tpu.pipeline_mode<synchronous>, transform_indices = @transform_2, window_bounds = array<i64: 1, 128>}, {transform_indices = @transform_3, window_bounds = array<i64: 16, 128>}]} {
    %c0 = arith.constant 0 : index
    %c0_0 = arith.constant 0 : index
    %0 = vector.load %arg1[%c0, %c0_0] : memref<16x128xf32, #tpu.memory_space<vmem>>, vector<16x128xf32>
    %c0_1 = arith.constant 0 : index
    %c0_2 = arith.constant 0 : index
    %1 = vector.load %arg2[%c0_1, %c0_2] : memref<1x128xf32, #tpu.memory_space<vmem>>, vector<1x128xf32>
    %2 = vector.broadcast %1 : vector<1x128xf32> to vector<16x128xf32>
    %3 = arith.mulf %0, %2 : vector<16x128xf32>
    %c0_3 = arith.constant 0 : index
    %c0_4 = arith.constant 0 : index
    %4 = vector.load %arg3[%c0_3, %c0_4] : memref<1x128xf32, #tpu.memory_space<vmem>>, vector<1x128xf32>
    %5 = vector.broadcast %4 : vector<1x128xf32> to vector<16x128xf32>
    %6 = arith.addf %3, %5 : vector<16x128xf32>
    %c0_5 = arith.constant 0 : index
    %c0_6 = arith.constant 0 : index
    %7 = vector.load %arg4[%c0_5, %c0_6] : memref<16x128xf32, #tpu.memory_space<vmem>>, vector<16x128xf32>
    tpu.vector_store %arg4[%c0_5, %c0_6], %6 {strides = array<i32>} : memref<16x128xf32, #tpu.memory_space<vmem>>, vector<16x128xf32>,
    return
  }
  func.func @transform_0(%arg0: i32) -> (i32, i32) {
    %c0_i32 = arith.constant 0 : i32
    %c0_i32_0 = arith.constant 0 : i32
    return %arg0, %c0_i32 : i32, i32
  }
  func.func @transform_1(%arg0: i32) -> (i32, i32) {
    %c0_i32 = arith.constant 0 : i32
    %c0_i32_0 = arith.constant 0 : i32
    %c0_i32_1 = arith.constant 0 : i32
    return %c0_i32, %c0_i32_0 : i32, i32
  }
  func.func @transform_2(%arg0: i32) -> (i32, i32) {
    %c0_i32 = arith.constant 0 : i32
    %c0_i32_0 = arith.constant 0 : i32
    %c0_i32_1 = arith.constant 0 : i32
    return %c0_i32, %c0_i32_0 : i32, i32
  }
  func.func @transform_3(%arg0: i32) -> (i32, i32) {
    %c0_i32 = arith.constant 0 : i32
    %c0_i32_0 = arith.constant 0 : i32
    return %arg0, %c0_i32 : i32, i32
  }
}

</mosaic_0001>

<llo_original>
// kernel: tpu_custom_call.1
$region0: #{tpu_custom_call.1}
  #allocation0 [shape = 'u32[]', space=smem, size = 0x4, offset = 0x4, fixed_abs, tag = 'smem constant byte address 0x4 - core index']
  #allocation1 [shape = 'u32[72,128]{1,0:T(1,128)}', space=vmem, size = 0x9000, scoped, tag = 'internal scratch']
  %s0 = inlined_call_operand.hbm [shape: f32[16,128], index: 0, kind: input, shape index: {}]
  %s1 = inlined_call_operand.hbm [shape: f32[1,128], index: 1, kind: input, shape index: {}]
  %s2 = inlined_call_operand.vmem [shape: f32[1,128], index: 2, kind: input, shape index: {}]
  %s3 = inlined_call_operand.hbm [shape: f32[16,128], index: 3, kind: output, shape index: {}]
  %s4 = sld [smem:[#allocation0]]
  $region30: #{tpu_custom_call.1} parent=0
    _
  %s6 = ssub.s32 1, %s4
  %s7 = scalar_select 0, %s6, %s4
  $region1: #{tpu_custom_call.1} parent=0
    #allocation2 [shape = 'u8[8192]{0}', space=vmem, size = 0x2000, scoped, tag = 'input window, operand 0, single buffered']
    #allocation3 [shape = 's32[1]{0}', space=sflag, size = 0x4, scoped, tag = 'scoped memory for tpu_custom_call.1']
    #allocation4 [shape = 's32[1]{0}', space=sflag, size = 0x4, scoped, tag = 'scoped memory for tpu_custom_call.1']
    #allocation5 [shape = 'u8[512]{0}', space=vmem, size = 0x400, scoped, tag = 'input window, operand 1, single buffered']
    #allocation6 [shape = 's32[1]{0}', space=sflag, size = 0x4, scoped, tag = 'scoped memory for tpu_custom_call.1']
    #allocation7 [shape = 'u8[8192]{0}', space=vmem, size = 0x2000, scoped, tag = 'output window, operand 0, single buffered']
    %8 = vsyncpa [#allocation3], 0
    %9 = vsyncpa [#allocation6], 0
    %10 = vsyncpa [#allocation4], 0
    // Predicated region
    $region2: #{tpu_custom_call.1} parent=1 // pred_check
      _
    $region3: #{tpu_custom_call.1} parent=1 // pred_check_branch
      %12 = sbr.rel (0) target = $region5
    $region4: #{tpu_custom_call.1} parent=1 // pred_region
      %14 = vsyncadd [#allocation3], 0
      %s15 = sshll.u32 %s0, 4
      %s16 = int_to_ptr.hbm [resolvable:$true] %s15
      %s17 = sshll.u32 [#allocation2], 4
      %s18 = int_to_ptr.vmem [resolvable:$true] %s17
      %23 = dma.hbm_to_vmem [thread:$0]  %s16, 256, %s18, [#allocation3], 128, 128, 8
    $region5: #{tpu_custom_call.1} parent=1 // pred_fallthru
      _
    // Predicated region
    $region6: #{tpu_custom_call.1} parent=1 // pred_check
      _
    $region7: #{tpu_custom_call.1} parent=1 // pred_check_branch
      %25 = sbr.rel (0) target = $region9
    $region8: #{tpu_custom_call.1} parent=1 // pred_region
      %27 = vsyncadd [#allocation6], 0
      %s29 = sshll.u32 %s1, 4
      %s30 = int_to_ptr.hbm [resolvable:$true] %s29
      %s31 = sshll.u32 [#allocation5], 4
      %s32 = int_to_ptr.vmem [resolvable:$true] %s31
      %34 = dma.hbm_to_vmem [thread:$0]  %s30, 16, %s32, [#allocation6]
    $region9: #{tpu_custom_call.1} parent=1 // pred_fallthru
      _
    // Predicated region
    $region10: #{tpu_custom_call.1} parent=1 // pred_check
      _
    $region11: #{tpu_custom_call.1} parent=1 // pred_check_branch
      %36 = sbr.rel (0) target = $region13
    $region12: #{tpu_custom_call.1} parent=1 // pred_region
      _
    $region13: #{tpu_custom_call.1} parent=1 // pred_fallthru
      _
    // Predicated region
    $region14: #{tpu_custom_call.1} parent=1 // pred_check
      _
    $region15: #{tpu_custom_call.1} parent=1 // pred_check_branch
      %38 = sbr.rel (0) target = $region17
    $region16: #{tpu_custom_call.1} parent=1 // pred_region
      %40 = dma.done [#allocation3], 256
    $region17: #{tpu_custom_call.1} parent=1 // pred_fallthru
      _
    // Predicated region
    $region18: #{tpu_custom_call.1} parent=1 // pred_check
      _
    $region19: #{tpu_custom_call.1} parent=1 // pred_check_branch
      %42 = sbr.rel (0) target = $region21
    $region20: #{tpu_custom_call.1} parent=1 // pred_region
      %44 = dma.done [#allocation6], 16
    $region21: #{tpu_custom_call.1} parent=1 // pred_fallthru
      _
    %v45 = vld [vmem:[#allocation2] sm:$0xff]
    %v46 = vld [vmem:[#allocation2 + $0x8] sm:$0xff]
    %v47 = vld [vmem:[#allocation5] sm:$0x1]
    %v49 = vperm.slane %v47, 0
    %v51 = vmul.f32 %v45, %v49
    %v52 = vmul.f32 %v46, %v49
    %v53 = vld [vmem:[%s2] sm:$0x1]
    %v55 = vperm.slane %v53, 0
    %v57 = vadd.f32 %v51, %v55
    %v58 = vadd.f32 %v52, %v55
    %59 = vst [vmem:[#allocation7] sm:$0xff] %v57
    %60 = vst [vmem:[#allocation7 + $0x8] sm:$0xff] %v58
    // Predicated region
    $region22: #{tpu_custom_call.1} parent=1 // pred_check
      _
    $region23: #{tpu_custom_call.1} parent=1 // pred_check_branch
      %62 = sbr.rel (0) target = $region25
    $region24: #{tpu_custom_call.1} parent=1 // pred_region
      %64 = vsyncadd [#allocation4], 0
      %s65 = sshll.u32 [#allocation7], 4
      %s66 = int_to_ptr.vmem [resolvable:$true] %s65
      %s67 = sshll.u32 %s3, 4
      %s68 = int_to_ptr.hbm [resolvable:$true] %s67
      %73 = dma.vmem_to_hbm [thread:$0]  %s66, 256, %s68, [#allocation4], 128, 128, 8
    $region25: #{tpu_custom_call.1} parent=1 // pred_fallthru
      _
    // Predicated region
    $region26: #{tpu_custom_call.1} parent=1 // pred_check
      _
    $region27: #{tpu_custom_call.1} parent=1 // pred_check_branch
      %75 = sbr.rel (0) target = $region29
    $region28: #{tpu_custom_call.1} parent=1 // pred_region
      %77 = dma.done [#allocation4], 256
    $region29: #{tpu_custom_call.1} parent=1 // pred_fallthru
      _
    %78 = vsyncpa [#allocation3], 1
    %79 = vsyncpa [#allocation6], 1
    %80 = vsyncpa [#allocation4], 1

</llo_original>
